<compile_context>
chip_gen: v5e
topology: v5e:2x2
jax: 0.10.0
libtpu: 0.0.40
codegen_flags: <defaults>
</compile_context>

<pallas_src>
import functools

import jax
import jax.numpy as jnp
import numpy as np
from jax.experimental import pallas as pl
from jax.experimental.pallas import tpu as pltpu


def _ce2d_kernel(logits_ref, targets_ref, out_ref, acc_ref, *,
                 hw, need_mask, last_start):
    """One block = `bn` images x one slab of `thw` pixels (lanes).

    Grid: (batch_block, pixel_chunk, block_in_chunk); the last axis is the
    reduction axis (accumulated in `acc_ref`, finalized on its last step).
    """
    j = pl.program_id(2)

    @pl.when(j == 0)
    def _():
        acc_ref[...] = jnp.zeros_like(acc_ref)

    x = logits_ref[...].astype(jnp.float32)        # (bn, C, thw) classes on sublanes
    tgt = targets_ref[...].astype(jnp.int32)       # (bn, 1, thw)
    _, c, _ = x.shape

    # stable log-sum-exp over the (small) class / sublane axis
    m = jnp.max(x, axis=1, keepdims=True)                             # (bn, 1, thw)
    lse = jnp.log(jnp.sum(jnp.exp(x - m), axis=1, keepdims=True))     # (bn, 1, thw)

    # target-class logit via one-hot select-sum (no materialized log-probs;
    # iota is (1, C, 1) and broadcast instead of a full (C, thw) tensor).
    class_ids = jax.lax.broadcasted_iota(jnp.int32, (1, c, 1), 1)
    logit_t = jnp.sum(jnp.where(class_ids == tgt, x, 0.0),
                      axis=1, keepdims=True)                          # (bn, 1, thw)

    nll = (m - logit_t) + lse                                         # (bn, 1, thw)

    if need_mask:
        # Only the very last block of the last pixel chunk is partial; every
        # other step takes the cheap unmasked add.
        is_edge = jnp.logical_and(
            pl.program_id(1) == pl.num_programs(1) - 1,
            j == pl.num_programs(2) - 1)

        @pl.when(jnp.logical_not(is_edge))
        def _():
            acc_ref[...] += nll

        @pl.when(is_edge)
        def _():
            col = jax.lax.broadcasted_iota(jnp.int32, nll.shape, 2)
            acc_ref[...] += jnp.where(col < (hw - last_start), nll, 0.0)
    else:
        acc_ref[...] += nll

    @pl.when(j == pl.num_programs(2) - 1)
    def _():
        out_ref[...] = jnp.sum(acc_ref[...])[None, None, None]


def cross_entropy_loss_2d(outputs, targets, *, max_lanes=65536):
    """outputs: (N, C, H, W) float (f32/bf16); targets: (N, H, W) int (int8/uint8/int32).

    Returns the scalar mean cross-entropy (== NLLLoss2d(log_softmax(outputs), targets)).
    """
    N, C, H, W = outputs.shape
    HW = H * W
    P = N * HW
    MiB = 1024 * 1024

    # Free reshapes (NCHW is contiguous): no HBM relayout, no dtype pre-cast.
    logits = outputs.reshape(N, C, HW)
    tgt = targets.reshape(N, 1, HW)
    if (not jnp.issubdtype(tgt.dtype, jnp.integer)) or jnp.dtype(tgt.dtype).itemsize > 4:
        tgt = tgt.astype(jnp.int32)   # int8/uint8/int32 pass through untouched

    logit_bytes = jnp.dtype(logits.dtype).itemsize
    tgt_bytes = jnp.dtype(tgt.dtype).itemsize

    # Generation-aware VMEM budget (v7x: 64 MiB/TC, v5e/v6e: 128 MiB).
    try:
        vmem_cap = int(getattr(pltpu.get_tpu_info(), "vmem_capacity_bytes", 64 * MiB))
    except Exception:  # conservative fallback works on every generation
        vmem_cap = 64 * MiB
    if vmem_cap >= 96 * MiB:          # v5e / v6e
        footprint_budget, vmem_limit = 48 * MiB, 80 * MiB
    else:                             # v7x (or unknown -> conservative)
        footprint_budget, vmem_limit = 24 * MiB, 44 * MiB

    # Bytes per pixel lane (per image in the block):
    #   2x double-buffered logits + 2x double-buffered targets + f32 accumulator.
    per_lane = 2 * C * logit_bytes + 2 * tgt_bytes + 4
    lane_budget = max(128, footprint_budget // per_lane)
    thw = min(max_lanes, lane_budget)
    thw = max(128, (thw // 128) * 128)

    if HW <= thw:
        # Whole image fits in one lane tile: block several images per grid step
        # to amortize per-step overhead (bn chosen as a divisor of N).
        thw = HW
        nbs, S = 1, 1
        need_mask = False
        last_start = 0
        bn_cap = max(1, min(max_lanes // max(1, HW),
                            footprint_budget // max(1, per_lane * HW)))
        bn = 1
        for d in range(min(N, bn_cap), 0, -1):
            if N % d == 0:
                bn = d
                break
    else:
        bn = 1
        nb_real = pl.cdiv(HW, thw)
        need_mask = (HW % thw) != 0
        last_start = (nb_real - 1) * thw
        # Split the pixel axis into parallel chunks so both v7x TensorCores get
        # work even for small N; harmless on single-core v5e/v6e.
        S = 2 if (nb_real % 2 == 0) else 1
        nbs = nb_real // S

    n_blocks = N // bn
    kernel = functools.partial(_ce2d_kernel, hw=HW, need_mask=need_mask,
                               last_start=last_start)

    partials = pl.pallas_call(
        kernel,
        out_shape=jax.ShapeDtypeStruct((n_blocks * S, 1, 1), jnp.float32),
        grid_spec=pltpu.PrefetchScalarGridSpec(
            num_scalar_prefetch=0,
            grid=(n_blocks, S, nbs),
            in_specs=[
                pl.BlockSpec((bn, C, thw), lambda b, s, j: (b, 0, s * nbs + j)),
                pl.BlockSpec((bn, 1, thw), lambda b, s, j: (b, 0, s * nbs + j)),
            ],
            out_specs=pl.BlockSpec((1, 1, 1), lambda b, s, j: (b * S + s, 0, 0)),
            scratch_shapes=[pltpu.VMEM((bn, 1, thw), jnp.float32)],
        ),
        compiler_params=pltpu.CompilerParams(
            dimension_semantics=("parallel", "parallel", "arbitrary"),
            vmem_limit_bytes=vmem_limit,
        ),
    )(logits, tgt)

    return jnp.sum(partials) / jnp.float32(P)


def _reference(outputs, targets):
    logp = jax.nn.log_softmax(outputs.astype(jnp.float32), axis=1)  # (N, C, H, W)
    gathered = jnp.take_along_axis(
        logp, targets[:, None, :, :].astype(jnp.int32), axis=1)
    return -jnp.mean(gathered)


if __name__ == "__main__":
    key = jax.random.PRNGKey(0)
    k1, k2, k3, k4, k5, k6 = jax.random.split(key, 6)

    # Test 1: typical small segmentation shapes; exercises the multi-image
    # (bn > 1) single-tile path.
    N, C, H, W = 2, 4, 16, 16
    outputs = jax.random.normal(k1, (N, C, H, W), dtype=jnp.float32)
    targets = jax.random.randint(k2, (N, H, W), 0, C, dtype=jnp.int32)
    loss = jax.block_until_ready(cross_entropy_loss_2d(outputs, targets))
    ref = _reference(outputs, targets)
    assert np.allclose(np.asarray(loss), np.asarray(ref), rtol=1e-5, atol=1e-5), (loss, ref)

    # Test 2: multi-block grid + parallel pixel-chunk split (S=2) + partial-tile
    # edge masking.
    N2, C2, H2, W2 = 2, 4, 20, 20
    outputs2 = jax.random.normal(k3, (N2, C2, H2, W2), dtype=jnp.float32)
    targets2 = jax.random.randint(k4, (N2, H2, W2), 0, C2, dtype=jnp.int32)
    loss2 = jax.block_until_ready(
        cross_entropy_loss_2d(outputs2, targets2, max_lanes=128))
    ref2 = _reference(outputs2, targets2)
    assert np.allclose(np.asarray(loss2), np.asarray(ref2), rtol=1e-5, atol=1e-5), (loss2, ref2)

    # Test 3: bf16 logits + int8 targets (reduced-HBM-byte path), N=1, S=1,
    # odd block count with edge mask.
    N3, C3, H3, W3 = 1, 4, 24, 24
    outputs3 = jax.random.normal(k5, (N3, C3, H3, W3), dtype=jnp.bfloat16)
    targets3 = jax.random.randint(k6, (N3, H3, W3), 0, C3, dtype=jnp.int8)
    loss3 = jax.block_until_ready(
        cross_entropy_loss_2d(outputs3, targets3, max_lanes=256))
    ref3 = _reference(outputs3, targets3)
    assert np.allclose(np.asarray(loss3), np.asarray(ref3), rtol=1e-4, atol=1e-4), (loss3, ref3)

    print("KERNEL_OK")
</pallas_src>

<mosaic_0001>
module attributes {stable_mosaic.version = 11 : i64} {
  func.func @_ce2d_kernel(%arg0: i32, %arg1: i32, %arg2: i32, %arg3: memref<2x4x256xf32, #tpu.memory_space<vmem>>, %arg4: memref<2x1x256xi32, #tpu.memory_space<vmem>>, %arg5: memref<1x1x1xf32, #tpu.memory_space<vmem>>, %arg6: memref<2x1x256xf32, #tpu.memory_space<vmem>>) attributes {dimension_semantics = [#tpu.dimension_semantics<parallel>, #tpu.dimension_semantics<parallel>, #tpu.dimension_semantics<arbitrary>], iteration_bounds = array<i64: 1, 1, 1>, scalar_prefetch = 0 : i64, scratch_operands = 1 : i64, tpu.core_type = #tpu.core_type<tc>, window_params = [{transform_indices = @transform_0, window_bounds = array<i64: 2, 4, 256>}, {transform_indices = @transform_1, window_bounds = array<i64: 2, 1, 256>}, {transform_indices = @transform_2, window_bounds = array<i64: 1, 1, 1>}]} {
    %c0_i32 = arith.constant 0 : i32
    %0 = arith.cmpi eq, %arg2, %c0_i32 : i32
    %1 = arith.extui %0 : i1 to i32
    %c0_i32_0 = arith.constant 0 : i32
    %2 = arith.cmpi ne, %1, %c0_i32_0 : i32
    scf.if %2 {
      %cst_17 = arith.constant 0.000000e+00 : f32
      %29 = vector.broadcast %cst_17 : f32 to vector<2x1x256xf32>
      %c0_18 = arith.constant 0 : index
      %c0_19 = arith.constant 0 : index
      %c0_20 = arith.constant 0 : index
      %30 = vector.load %arg6[%c0_18, %c0_19, %c0_20] : memref<2x1x256xf32, #tpu.memory_space<vmem>>, vector<2x1x256xf32>
      tpu.vector_store %arg6[%c0_18, %c0_19, %c0_20], %29 {strides = array<i32>} : memref<2x1x256xf32, #tpu.memory_space<vmem>>, vector<2x1x256xf32>,
    } else {
    }
    %c0 = arith.constant 0 : index
    %c0_1 = arith.constant 0 : index
    %c0_2 = arith.constant 0 : index
    %3 = vector.load %arg3[%c0, %c0_1, %c0_2] : memref<2x4x256xf32, #tpu.memory_space<vmem>>, vector<2x4x256xf32>
    %c0_3 = arith.constant 0 : index
    %c0_4 = arith.constant 0 : index
    %c0_5 = arith.constant 0 : index
    %4 = vector.load %arg4[%c0_3, %c0_4, %c0_5] : memref<2x1x256xi32, #tpu.memory_space<vmem>>, vector<2x1x256xi32>
    %cst = arith.constant dense<0xFF800000> : vector<2x256xf32>
    %5 = vector.multi_reduction <maximumf>, %3, %cst [1] : vector<2x4x256xf32> to vector<2x256xf32>
    %6 = vector.shape_cast %5 : vector<2x256xf32> to vector<2x1x256xf32>
    %7 = vector.broadcast %6 : vector<2x1x256xf32> to vector<2x4x256xf32>
    %8 = arith.subf %3, %7 : vector<2x4x256xf32>
    %9 = math.exp %8 : vector<2x4x256xf32>
    %cst_6 = arith.constant dense<0.000000e+00> : vector<2x256xf32>
    %10 = vector.multi_reduction <add>, %9, %cst_6 [1] : vector<2x4x256xf32> to vector<2x256xf32>
    %11 = vector.shape_cast %10 : vector<2x256xf32> to vector<2x1x256xf32>
    %12 = math.log %11 : vector<2x1x256xf32>
    %13 = tpu.iota {dimensions = array<i32: 1>} : vector<1x4x1xi32>
    %14 = vector.broadcast %13 : vector<1x4x1xi32> to vector<2x4x256xi32>
    %15 = vector.broadcast %4 : vector<2x1x256xi32> to vector<2x4x256xi32>
    %16 = arith.cmpi eq, %14, %15 : vector<2x4x256xi32>
    %cst_7 = arith.constant 0.000000e+00 : f32
    %17 = vector.broadcast %cst_7 : f32 to vector<2x4x256xf32>
    %18 = arith.select %16, %3, %17 : vector<2x4x256xi1>, vector<2x4x256xf32>
    %cst_8 = arith.constant dense<0.000000e+00> : vector<2x256xf32>
    %19 = vector.multi_reduction <add>, %18, %cst_8 [1] : vector<2x4x256xf32> to vector<2x256xf32>
    %20 = vector.shape_cast %19 : vector<2x256xf32> to vector<2x1x256xf32>
    %21 = arith.subf %6, %20 : vector<2x1x256xf32>
    %22 = arith.addf %21, %12 : vector<2x1x256xf32>
    %c0_9 = arith.constant 0 : index
    %c0_10 = arith.constant 0 : index
    %c0_11 = arith.constant 0 : index
    %23 = vector.load %arg6[%c0_9, %c0_10, %c0_11] : memref<2x1x256xf32, #tpu.memory_space<vmem>>, vector<2x1x256xf32>
    %24 = arith.addf %23, %22 : vector<2x1x256xf32>
    %c0_12 = arith.constant 0 : index
    %c0_13 = arith.constant 0 : index
    %c0_14 = arith.constant 0 : index
    %25 = vector.load %arg6[%c0_12, %c0_13, %c0_14] : memref<2x1x256xf32, #tpu.memory_space<vmem>>, vector<2x1x256xf32>
    tpu.vector_store %arg6[%c0_12, %c0_13, %c0_14], %24 {strides = array<i32>} : memref<2x1x256xf32, #tpu.memory_space<vmem>>, vector<2x1x256xf32>,
    %c0_i32_15 = arith.constant 0 : i32
    %26 = arith.cmpi eq, %arg2, %c0_i32_15 : i32
    %27 = arith.extui %26 : i1 to i32
    %c0_i32_16 = arith.constant 0 : i32
    %28 = arith.cmpi ne, %27, %c0_i32_16 : i32
    scf.if %28 {
      %c0_17 = arith.constant 0 : index
      %c0_18 = arith.constant 0 : index
      %c0_19 = arith.constant 0 : index
      %29 = vector.load %arg6[%c0_17, %c0_18, %c0_19] : memref<2x1x256xf32, #tpu.memory_space<vmem>>, vector<2x1x256xf32>
      %30 = vector.shape_cast %29 : vector<2x1x256xf32> to vector<1x2x1x256xf32>
      %cst_20 = arith.constant dense<0.000000e+00> : vector<1xf32>
      %31 = vector.multi_reduction <add>, %30, %cst_20 [1, 2, 3] : vector<1x2x1x256xf32> to vector<1xf32>
      %32 = vector.shape_cast %31 : vector<1xf32> to vector<1x1x1x1xf32>
      %33 = vector.extract %32[0, 0, 0, 0] : f32 from vector<1x1x1x1xf32>
      %34 = vector.broadcast %33 : f32 to vector<1x1x1xf32>
      %c0_21 = arith.constant 0 : index
      %c0_22 = arith.constant 0 : index
      %c0_23 = arith.constant 0 : index
      %35 = vector.load %arg5[%c0_21, %c0_22, %c0_23] : memref<1x1x1xf32, #tpu.memory_space<vmem>>, vector<1x1x1xf32>
      tpu.vector_store %arg5[%c0_21, %c0_22, %c0_23], %34 {strides = array<i32>} : memref<1x1x1xf32, #tpu.memory_space<vmem>>, vector<1x1x1xf32>,
    } else {
    }
    return
  }
  func.func @transform_0(%arg0: i32, %arg1: i32, %arg2: i32) -> (i32, i32, i32) {
    %c1_i32 = arith.constant 1 : i32
    %0 = arith.muli %arg1, %c1_i32 : i32
    %1 = arith.addi %0, %arg2 : i32
    %c0_i32 = arith.constant 0 : i32
    %c0_i32_0 = arith.constant 0 : i32
    return %arg0, %c0_i32, %1 : i32, i32, i32
  }
  func.func @transform_1(%arg0: i32, %arg1: i32, %arg2: i32) -> (i32, i32, i32) {
    %c1_i32 = arith.constant 1 : i32
    %0 = arith.muli %arg1, %c1_i32 : i32
    %1 = arith.addi %0, %arg2 : i32
    %c0_i32 = arith.constant 0 : i32
    %c0_i32_0 = arith.constant 0 : i32
    return %arg0, %c0_i32, %1 : i32, i32, i32
  }
  func.func @transform_2(%arg0: i32, %arg1: i32, %arg2: i32) -> (i32, i32, i32) {
    %c1_i32 = arith.constant 1 : i32
    %0 = arith.muli %arg0, %c1_i32 : i32
    %1 = arith.addi %0, %arg1 : i32
    %c0_i32 = arith.constant 0 : i32
    %c0_i32_0 = arith.constant 0 : i32
    %c0_i32_1 = arith.constant 0 : i32
    return %1, %c0_i32, %c0_i32_0 : i32, i32, i32
  }
}

</mosaic_0001>

<llo_original>
// kernel: tpu_custom_call.1
$region0: #{tpu_custom_call.1}
  #allocation0 [shape = 'u32[]', space=smem, size = 0x4, offset = 0x4, fixed_abs, tag = 'smem constant byte address 0x4 - core index']
  #allocation1 [shape = 'u32[72,128]{1,0:T(1,128)}', space=vmem, size = 0x9000, scoped, tag = 'internal scratch']
  #allocation2 [shape = 'f32[2,1,256]{2,1,0:T(1,128)}', space=vmem, size = 0x800, scoped, tag = 'scratch operand']
  %s0 = inlined_call_operand.hbm [shape: f32[2,4,256], index: 0, kind: input, shape index: {}]
  %s1 = inlined_call_operand.hbm [shape: s32[2,1,256], index: 1, kind: input, shape index: {}]
  %s2 = inlined_call_operand.hbm [shape: f32[1,1,1], index: 2, kind: output, shape index: {}]
  %s3 = sld [smem:[#allocation0]]
  $region34: #{tpu_custom_call.1} parent=0
    _
  %s5 = ssub.s32 1, %s3
  %s6 = scalar_select 0, %s5, %s3
  $region1: #{tpu_custom_call.1} parent=0
    #allocation3 [shape = 'u8[8192]{0}', space=vmem, size = 0x2000, scoped, tag = 'input window, operand 0, single buffered']
    #allocation4 [shape = 's32[1]{0}', space=sflag, size = 0x4, scoped, tag = 'scoped memory for tpu_custom_call.1']
    #allocation5 [shape = 's32[1]{0}', space=sflag, size = 0x4, scoped, tag = 'scoped memory for tpu_custom_call.1']
    #allocation6 [shape = 'u8[2048]{0}', space=vmem, size = 0x800, scoped, tag = 'input window, operand 1, single buffered']
    #allocation7 [shape = 's32[1]{0}', space=sflag, size = 0x4, scoped, tag = 'scoped memory for tpu_custom_call.1']
    #allocation8 [shape = 'u8[512]{0}', space=vmem, size = 0x400, scoped, tag = 'output window, operand 0, single buffered']
    %7 = vsyncpa [#allocation4], 0
    %8 = vsyncpa [#allocation7], 0
    %9 = vsyncpa [#allocation5], 0
    // Predicated region
    $region2: #{tpu_custom_call.1} parent=1 // pred_check
      _
    $region3: #{tpu_custom_call.1} parent=1 // pred_check_branch
      %11 = sbr.rel (0) target = $region5
    $region4: #{tpu_custom_call.1} parent=1 // pred_region
      %s12 = sadd.s32 0, 0
      %s13 = smul.u32 2, %s12
      %15 = vsyncadd [#allocation4], 0
      %s16 = smul.addr %s13, 4
      %s17 = scalar_lea.hbm %s0, %s16
      %s18 = sshll.u32 %s17, 4
      %s19 = int_to_ptr.hbm [resolvable:$true] %s18
      %s20 = sshll.u32 [#allocation3], 4
      %s21 = int_to_ptr.vmem [resolvable:$true] %s20
      %26 = dma.hbm_to_vmem [thread:$0]  %s19, 256, %s21, [#allocation4], 128, 128, 8
    $region5: #{tpu_custom_call.1} parent=1 // pred_fallthru
      _
    // Predicated region
    $region6: #{tpu_custom_call.1} parent=1 // pred_check
      _
    $region7: #{tpu_custom_call.1} parent=1 // pred_check_branch
      %28 = sbr.rel (0) target = $region9
    $region8: #{tpu_custom_call.1} parent=1 // pred_region
      %s29 = sadd.s32 0, 0
      %s30 = smul.u32 2, %s29
      %32 = vsyncadd [#allocation7], 0
      %s33 = scalar_lea.hbm %s1, %s30
      %s34 = sshll.u32 %s33, 4
      %s35 = int_to_ptr.hbm [resolvable:$true] %s34
      %s36 = sshll.u32 [#allocation6], 4
      %s37 = int_to_ptr.vmem [resolvable:$true] %s36
      %42 = dma.hbm_to_vmem [thread:$0]  %s35, 64, %s37, [#allocation7], 32, 32, 2
    $region9: #{tpu_custom_call.1} parent=1 // pred_fallthru
      _
    // Predicated region
    $region10: #{tpu_custom_call.1} parent=1 // pred_check
      _
    $region11: #{tpu_custom_call.1} parent=1 // pred_check_branch
      %44 = sbr.rel (0) target = $region13
    $region12: #{tpu_custom_call.1} parent=1 // pred_region
      %46 = dma.done [#allocation4], 256
    $region13: #{tpu_custom_call.1} parent=1 // pred_fallthru
      _
    // Predicated region
    $region14: #{tpu_custom_call.1} parent=1 // pred_check
      _
    $region15: #{tpu_custom_call.1} parent=1 // pred_check_branch
      %48 = sbr.rel (0) target = $region17
    $region16: #{tpu_custom_call.1} parent=1 // pred_region
      %50 = dma.done [#allocation7], 64
    $region17: #{tpu_custom_call.1} parent=1 // pred_fallthru
      _
    %s51 = sadd.s32 0, 0
    %s52 = smul.u32 2, %s51
    %s53 = sadd.s32 0, 0
    %s54 = smul.u32 2, %s53
    %s55 = sadd.s32 0, 0
    %p56 = scmp.eq.s32.totalorder 0, 0
    // Predicated region
    $region18: #{tpu_custom_call.1} parent=1 // pred_check
      %p57 = pneg %p56
    $region19: #{tpu_custom_call.1} parent=1 // pred_check_branch
      %59 = sbr.rel (%p57) target = $region21
    $region20: #{tpu_custom_call.1} parent=1 // pred_region
      %v60 = vlaneseq
      %vm61 = vcmp.ge.s32.totalorder %v60, 0
      %vm62 = vcmp.lt.s32.totalorder %v60, 256
      %vm63 = vmand %vm61, %vm62
      %64 = vst.msk [vmem:[#allocation2] sm:$0x3] %vm63, 0.0
      %65 = vst.msk [vmem:[#allocation2 + $0x2] sm:$0x3] %vm63, 0.0
    $region21: #{tpu_custom_call.1} parent=1 // pred_fallthru
      _
    %v66 = vld [vmem:[#allocation3] sm:$0xff]
    %v67 = vld [vmem:[#allocation3 + $0x8] sm:$0xff]
    %v68 = vld [vmem:[#allocation6] sm:$0x3]
    %v69 = vld [vmem:[#allocation6 + $0x2] sm:$0x3]
    %72 = vst [vmem:[#allocation1] ss:$2 sm:$0xff] %v66
    %v73 = vld.sshfl [vmem:[#allocation1] sm:$0xff pattern:$0x75316420]
    %v74 = vld.sshfl [vmem:[#allocation1 + $0x8] sm:$0xff pattern:$0x75316420]
    %s75 = scalar_lea.vmem [#allocation1], 16
    %76 = vst [vmem:[%s75] ss:$2 sm:$0xff] %v67
    %v77 = vld.sshfl [vmem:[#allocation1 + $0x10] sm:$0xff pattern:$0x75316420]
    %v78 = vld.sshfl [vmem:[#allocation1 + $0x18] sm:$0xff pattern:$0x75316420]
    %vm83 = vcmask 1043456
    %v84 = vsel %vm83, %v73, -inf
    %v85 = vrot.slane %v84, 4
    %v86 = vmax.f32 %v84, %v85
    %v87 = vrot.slane %v86, 2
    %v88 = vmax.f32 %v86, %v87
    %v89 = vrot.slane %v88, 1
    %v90 = vmax.f32 %v88, %v89
    %v91 = vsel %vm83, %v74, -inf
    %v92 = vrot.slane %v91, 4
    %v93 = vmax.f32 %v91, %v92
    %v94 = vrot.slane %v93, 2
    %v95 = vmax.f32 %v93, %v94
    %v96 = vrot.slane %v95, 1
    %v97 = vmax.f32 %v95, %v96
    %v98 = vsel %vm83, %v77, -inf
    %v99 = vrot.slane %v98, 4
    %v100 = vmax.f32 %v98, %v99
    %v101 = vrot.slane %v100, 2
    %v102 = vmax.f32 %v100, %v101
    %v103 = vrot.slane %v102, 1
    %v104 = vmax.f32 %v102, %v103
    %v105 = vsel %vm83, %v78, -inf
    %v106 = vrot.slane %v105, 4
    %v107 = vmax.f32 %v105, %v106
    %v108 = vrot.slane %v107, 2
    %v109 = vmax.f32 %v107, %v108
    %v110 = vrot.slane %v109, 1
    %v111 = vmax.f32 %v109, %v110
    %v116 = vrot.slane %v97, 4
    %v117 = vrot.slane %v111, 4
    %v118 = vsel %vm83, %v90, %v116
    %v119 = vsel %vm83, %v104, %v117
    %v122 = vsub.f32 %v66, %v118
    %v123 = vsub.f32 %v67, %v119
    %v124 = vmul.f32 %v122, 1.442695
    %v125 = vpow.pop %v124
    %v126 = vmul.f32 %v123, 1.442695
    %v127 = vpow.pop %v126
    %130 = vst [vmem:[#allocation1] ss:$2 sm:$0xff] %v125
    %v131 = vld.sshfl [vmem:[#allocation1] sm:$0xff pattern:$0x75316420]
    %v132 = vld.sshfl [vmem:[#allocation1 + $0x8] sm:$0xff pattern:$0x75316420]
    %s133 = scalar_lea.vmem [#allocation1], 16
    %134 = vst [vmem:[%s133] ss:$2 sm:$0xff] %v127
    %v135 = vld.sshfl [vmem:[#allocation1 + $0x10] sm:$0xff pattern:$0x75316420]
    %v136 = vld.sshfl [vmem:[#allocation1 + $0x18] sm:$0xff pattern:$0x75316420]
    %v141 = vsel %vm83, %v131, 0.0
    %v142 = vrot.slane %v141, 4
    %v143 = vadd.f32 %v141, %v142
    %v144 = vrot.slane %v143, 2
    %v145 = vadd.f32 %v143, %v144
    %v146 = vrot.slane %v145, 1
    %v147 = vadd.f32 %v145, %v146
    %v148 = vsel %vm83, %v132, 0.0
    %v149 = vrot.slane %v148, 4
    %v150 = vadd.f32 %v148, %v149
    %v151 = vrot.slane %v150, 2
    %v152 = vadd.f32 %v150, %v151
    %v153 = vrot.slane %v152, 1
    %v154 = vadd.f32 %v152, %v153
    %v155 = vsel %vm83, %v135, 0.0
    %v156 = vrot.slane %v155, 4
    %v157 = vadd.f32 %v155, %v156
    %v158 = vrot.slane %v157, 2
    %v159 = vadd.f32 %v157, %v158
    %v160 = vrot.slane %v159, 1
    %v161 = vadd.f32 %v159, %v160
    %v162 = vsel %vm83, %v136, 0.0
    %v163 = vrot.slane %v162, 4
    %v164 = vadd.f32 %v162, %v163
    %v165 = vrot.slane %v164, 2
    %v166 = vadd.f32 %v164, %v165
    %v167 = vrot.slane %v166, 1
    %v168 = vadd.f32 %v166, %v167
    %v169 = vlog2.pop %v147
    %v170 = vmul.f32 %v169, 0.6931472
    %v171 = vlog2.pop %v154
    %v172 = vmul.f32 %v171, 0.6931472
    %v173 = vlog2.pop %v161
    %v174 = vmul.f32 %v173, 0.6931472
    %v175 = vlog2.pop %v168
    %v176 = vmul.f32 %v175, 0.6931472
    %v177 = vlaneseq
    %v178 = vshrl.u32 %v177, 7
    %v179 = vperm.slane %v68, 0
    %v180 = vperm.slane %v68, 1
    %v181 = vperm.slane %v69, 0
    %v182 = vperm.slane %v69, 1
    %vm183 = vcmp.eq.s32.totalorder %v178, %v179
    %vm184 = vcmp.eq.s32.totalorder %v178, %v180
    %vm185 = vcmp.eq.s32.totalorder %v178, %v181
    %vm186 = vcmp.eq.s32.totalorder %v178, %v182
    %187 = vst [vmem:[#allocation1] ss:$2 sm:$0xff] %v66
    %v188 = vld.sshfl [vmem:[#allocation1] sm:$0xff pattern:$0x75316420]
    %v189 = vld.sshfl [vmem:[#allocation1 + $0x8] sm:$0xff pattern:$0x75316420]
    %s190 = scalar_lea.vmem [#allocation1], 16
    %191 = vst [vmem:[%s190] ss:$2 sm:$0xff] %v67
    %v192 = vld.sshfl [vmem:[#allocation1 + $0x10] sm:$0xff pattern:$0x75316420]
    %v193 = vld.sshfl [vmem:[#allocation1 + $0x18] sm:$0xff pattern:$0x75316420]
    %v198 = vsel %vm183, %v188, 0.0
    %v199 = vsel %vm184, %v189, 0.0
    %v200 = vsel %vm185, %v192, 0.0
    %v201 = vsel %vm186, %v193, 0.0
    %v202 = vsel %vm83, %v198, 0.0
    %v203 = vrot.slane %v202, 4
    %v204 = vadd.f32 %v202, %v203
    %v205 = vrot.slane %v204, 2
    %v206 = vadd.f32 %v204, %v205
    %v207 = vrot.slane %v206, 1
    %v208 = vadd.f32 %v206, %v207
    %v209 = vsel %vm83, %v199, 0.0
    %v210 = vrot.slane %v209, 4
    %v211 = vadd.f32 %v209, %v210
    %v212 = vrot.slane %v211, 2
    %v213 = vadd.f32 %v211, %v212
    %v214 = vrot.slane %v213, 1
    %v215 = vadd.f32 %v213, %v214
    %v216 = vsel %vm83, %v200, 0.0
    %v217 = vrot.slane %v216, 4
    %v218 = vadd.f32 %v216, %v217
    %v219 = vrot.slane %v218, 2
    %v220 = vadd.f32 %v218, %v219
    %v221 = vrot.slane %v220, 1
    %v222 = vadd.f32 %v220, %v221
    %v223 = vsel %vm83, %v201, 0.0
    %v224 = vrot.slane %v223, 4
    %v225 = vadd.f32 %v223, %v224
    %v226 = vrot.slane %v225, 2
    %v227 = vadd.f32 %v225, %v226
    %v228 = vrot.slane %v227, 1
    %v229 = vadd.f32 %v227, %v228
    %v230 = vsub.f32 %v90, %v208
    %v231 = vsub.f32 %v97, %v215
    %v232 = vsub.f32 %v104, %v222
    %v233 = vsub.f32 %v111, %v229
    %v234 = vadd.f32 %v230, %v170
    %v235 = vadd.f32 %v231, %v172
    %v236 = vadd.f32 %v232, %v174
    %v237 = vadd.f32 %v233, %v176
    %v238 = vld [vmem:[#allocation2] sm:$0x3]
    %v239 = vld [vmem:[#allocation2 + $0x2] sm:$0x3]
    %v244 = vrot.slane %v235, 7
    %v245 = vrot.slane %v237, 7
    %vm246 = vcmask 1040384
    %v247 = vsel %vm246, %v234, %v244
    %v248 = vsel %vm246, %v236, %v245
    %v251 = vadd.f32 %v238, %v247
    %v252 = vadd.f32 %v239, %v248
    %v253 = vlaneseq
    %vm254 = vcmp.ge.s32.totalorder %v253, 0
    %vm255 = vcmp.lt.s32.totalorder %v253, 256
    %vm256 = vmand %vm254, %vm255
    %257 = vst.msk [vmem:[#allocation2] sm:$0x3] %vm256, %v251
    %258 = vst.msk [vmem:[#allocation2 + $0x2] sm:$0x3] %vm256, %v252
    // Predicated region
    $region22: #{tpu_custom_call.1} parent=1 // pred_check
      %p259 = pneg %p56
    $region23: #{tpu_custom_call.1} parent=1 // pred_check_branch
      %261 = sbr.rel (%p259) target = $region25
    $region24: #{tpu_custom_call.1} parent=1 // pred_region
      %v262 = vld [vmem:[#allocation2] sm:$0x3]
      %v263 = vld [vmem:[#allocation2 + $0x2] sm:$0x3]
      %v266 = vperm.slane %v262, 0
      %v267 = vperm.slane %v262, 1
      %v268 = vperm.slane %v263, 0
      %v269 = vperm.slane %v263, 1
      %v274 = vsel %vm246, %v266, 0.0
      %v275 = vsel %vm246, %v267, 0.0
      %v276 = vadd.f32 %v274, %v275
      %v277 = vsel %vm246, %v268, 0.0
      %v278 = vadd.f32 %v276, %v277
      %v279 = vsel %vm246, %v269, 0.0
      %v280 = vadd.f32 %v278, %v279
      %281 = vadd.xlane.f32.xlu0 %v280
      %v282 = vpop.xlane.xlu0 %281
      %v283 = vrot.slane %v282, 4
      %v284 = vadd.f32 %v282, %v283
      %v285 = vrot.slane %v284, 2
      %v286 = vadd.f32 %v284, %v285
      %v287 = vrot.slane %v286, 1
      %v288 = vadd.f32 %v286, %v287
      %s289 = vtos %v288
      %v290 = vstv %s289
      %vm291 = vcmask 0
      %292 = vst.msk [vmem:[#allocation8] sm:$0x1] %vm291, %v290
    $region25: #{tpu_custom_call.1} parent=1 // pred_fallthru
      _
    // Predicated region
    $region26: #{tpu_custom_call.1} parent=1 // pred_check
      _
    $region27: #{tpu_custom_call.1} parent=1 // pred_check_branch
      %294 = sbr.rel (0) target = $region29
    $region28: #{tpu_custom_call.1} parent=1 // pred_region
      %s295 = sadd.s32 0, 0
      %297 = vsyncadd [#allocation5], 0
      %s298 = scalar_lea.hbm %s2, %s295
      %s300 = sshll.u32 [#allocation8], 4
      %s301 = int_to_ptr.vmem [resolvable:$true] %s300
      %s302 = sshll.u32 %s298, 4
      %s303 = int_to_ptr.hbm [resolvable:$true] %s302
      %305 = dma.vmem_to_hbm [thread:$0]  %s301, 16, %s303, [#allocation5]
    $region29: #{tpu_custom_call.1} parent=1 // pred_fallthru
      _
    // Predicated region
    $region30: #{tpu_custom_call.1} parent=1 // pred_check
      _
    $region31: #{tpu_custom_call.1} parent=1 // pred_check_branch
      %307 = sbr.rel (0) target = $region33
    $region32: #{tpu_custom_call.1} parent=1 // pred_region
      %309 = dma.done [#allocation5], 16
    $region33: #{tpu_custom_call.1} parent=1 // pred_fallthru
      _
    %310 = vsyncpa [#allocation4], 1
    %311 = vsyncpa [#allocation7], 1
    %312 = vsyncpa [#allocation5], 1

</llo_original>
